<compile_context>
chip_gen: v7x
topology: tpu7x:2x2x1
jax: 0.10.0
libtpu: 0.0.40
codegen_flags: <defaults>
</compile_context>

<pallas_src>
import functools

import jax
import jax.numpy as jnp
from jax import lax
from jax.experimental import pallas as pl
from jax.experimental.pallas import tpu as pltpu


def _head_kernel(x_ref, wqkv_ref, out_ref, *, nbatch: int, seqlen: int, cpad: int,
                 mxu_dtype):
    """x_ref: (B*T, Cp), wqkv_ref: (Cp, 3*Cp), out_ref: (B*T, Cp)."""
    B, T, Cp = nbatch, seqlen, cpad

    # Fused QKV projection for the whole (flattened) batch: one tall matmul (M=B*T, N=3*Cp).
    # Operands are already in mxu_dtype (bf16 by default); accumulate in f32.
    qkv = jnp.dot(x_ref[...], wqkv_ref[...], preferred_element_type=jnp.float32)  # (B*T, 3Cp) f32

    # Split batch back out (sublane-aligned reshape: 16 -> (2, 8)) and take tile-aligned
    # 128-lane slices for q/k/v (each projection owns its own lane tile in the fused weight).
    qkv = qkv.reshape(B, T, 3 * Cp)
    if mxu_dtype != jnp.float32:
        qkv_mm = qkv.astype(mxu_dtype)      # bf16 operands for the attention matmuls
    else:
        qkv_mm = qkv
    q = qkv_mm[:, :, 0:Cp]                  # (B, T, Cp)  -- C^-0.5 already folded into Wq
    k = qkv_mm[:, :, Cp:2 * Cp]             # (B, T, Cp)
    v = qkv_mm[:, :, 2 * Cp:3 * Cp]         # (B, T, Cp)

    # Batched q @ k^T without materializing a transpose: contract last dims, batch over B.
    wei = lax.dot_general(
        q, k,
        dimension_numbers=(((2,), (2,)), ((0,), (0,))),
        preferred_element_type=jnp.float32,
    )                                                                  # (B, T, T) f32

    # Causal mask (masked_fill(tril == 0, -inf)); diagonal always unmasked -> no all--inf rows.
    row = lax.broadcasted_iota(jnp.int32, (B, T, T), 1)
    col = lax.broadcasted_iota(jnp.int32, (B, T, T), 2)
    wei = jnp.where(col <= row, wei, -jnp.inf)

    # Numerically stable softmax, all in f32, exact divide (approx reciprocal removed: it was
    # the source of the 2.3e-3 mismatch and the EUP is not the bottleneck at this size).
    wei = wei - jnp.max(wei, axis=-1, keepdims=True)
    p = jnp.exp(wei)
    p = p / jnp.sum(p, axis=-1, keepdims=True)                         # (B, T, T) f32

    # p @ v, batched; cast p to the MXU dtype only when v is in that dtype.
    p_mm = p.astype(mxu_dtype) if mxu_dtype != jnp.float32 else p
    out = lax.dot_general(
        p_mm, v,
        dimension_numbers=(((2,), (1,)), ((0,), (0,))),
        preferred_element_type=jnp.float32,
    )                                                                  # (B, T, Cp) f32

    # Lane-dense (128-wide) full-tile store.
    out_ref[...] = out.reshape(B * T, Cp).astype(out_ref.dtype)


@functools.partial(jax.jit, static_argnames=("matmul_dtype",))
def head_forward(x, wq, wk, wv, matmul_dtype=jnp.bfloat16):
    """Forward pass of Head.

    x: (B, T, C); wq/wk/wv: (C, C) in (in, out) layout (== torch weight.T).
    matmul_dtype: dtype of MXU operands (bf16 default for v6e/v7x throughput; f32 for parity).
    """
    B, T, C = x.shape
    Cp = -(-C // 128) * 128          # pad head dim to a full 128-lane tile
    scale = C ** -0.5

    # Fuse Wq/Wk/Wv into one (Cp, 3*Cp) operand; each projection gets its own 128-lane tile so
    # the in-kernel slices are tile-aligned.  Fold the C^-0.5 score scale into the Q columns.
    w_qkv = jnp.zeros((Cp, 3 * Cp), jnp.float32)
    w_qkv = w_qkv.at[:C, 0:C].set(wq.astype(jnp.float32) * scale)
    w_qkv = w_qkv.at[:C, Cp:Cp + C].set(wk.astype(jnp.float32))
    w_qkv = w_qkv.at[:C, 2 * Cp:2 * Cp + C].set(wv.astype(jnp.float32))
    w_qkv = w_qkv.astype(matmul_dtype)

    # Fold batch into M and pad the lane dim; padded input channels are zero, and the padded
    # weight rows/cols are zero, so results are unchanged.
    x2 = x.reshape(B * T, C).astype(jnp.float32)
    x_pad = jnp.pad(x2, ((0, 0), (0, Cp - C))).astype(matmul_dtype)

    kernel = functools.partial(
        _head_kernel, nbatch=B, seqlen=T, cpad=Cp, mxu_dtype=matmul_dtype)

    out = pl.pallas_call(
        kernel,
        out_shape=jax.ShapeDtypeStruct((B * T, Cp), jnp.float32),
        # Single step: everything fits VMEM at this size; per-step pipeline overhead would
        # dominate.  For large B*T add a leading "parallel" batch/row axis (v7x: 2 TCs); for
        # large T move to flash-style (q_tile, kv_tile) tiling with online softmax.
        grid=(1,),
        in_specs=[
            pl.BlockSpec((B * T, Cp), lambda i: (0, 0)),       # x (flattened, lane-padded)
            pl.BlockSpec((Cp, 3 * Cp), lambda i: (0, 0)),      # fused Wqkv
        ],
        out_specs=pl.BlockSpec((B * T, Cp), lambda i: (0, 0)),
        compiler_params=pltpu.CompilerParams(
            dimension_semantics=("arbitrary",)),
    )(x_pad, w_qkv)

    return out[:, :C].reshape(B, T, C)


def _reference_head(x, wq, wk, wv):
    """Pure-JAX reference mirroring the PyTorch module (true f32: HIGHEST matmul precision)."""
    B, T, C = x.shape
    hi = jax.lax.Precision.HIGHEST
    q = jnp.dot(x, wq, precision=hi)
    k = jnp.dot(x, wk, precision=hi)
    v = jnp.dot(x, wv, precision=hi)
    wei = jnp.einsum("btc,bsc->bts", q, k, precision=hi) * (C ** -0.5)
    mask = jnp.tril(jnp.ones((T, T), dtype=bool))
    wei = jnp.where(mask[None], wei, -jnp.inf)
    wei = jax.nn.softmax(wei, axis=-1)
    return jnp.einsum("bts,bsc->btc", wei, v, precision=hi)


if __name__ == "__main__":
    B, T, C = 2, 8, 32

    key = jax.random.PRNGKey(0)
    kx, kq, kk, kv = jax.random.split(key, 4)
    x = jax.random.normal(kx, (B, T, C), jnp.float32)
    s = 0.1
    wq = s * jax.random.normal(kq, (C, C), jnp.float32)
    wk = s * jax.random.normal(kk, (C, C), jnp.float32)
    wv = s * jax.random.normal(kv, (C, C), jnp.float32)

    ref = _reference_head(x, wq, wk, wv)

    # f32-operand path: exact softmax divide -> tight parity with the PyTorch/f32 reference.
    out_f32 = jax.block_until_ready(head_forward(x, wq, wk, wv, matmul_dtype=jnp.float32))
    assert out_f32.shape == (B, T, C)
    err_f32 = float(jnp.max(jnp.abs(out_f32 - ref)))
    assert jnp.allclose(out_f32, ref, atol=3e-3, rtol=3e-3), err_f32

    # bf16 MXU operands (v6e/v7x throughput path), f32 accumulation + f32 softmax.
    # Tolerance widened accordingly (bf16 ~0.4% relative operand rounding).
    out_bf16 = jax.block_until_ready(head_forward(x, wq, wk, wv))
    assert out_bf16.shape == (B, T, C)
    err_bf16 = float(jnp.max(jnp.abs(out_bf16 - ref)))
    assert jnp.allclose(out_bf16, ref, atol=3e-2, rtol=3e-2), err_bf16

    print("KERNEL_OK")
</pallas_src>

<mosaic_0001>
module attributes {stable_mosaic.version = 11 : i64} {
  func.func @_head_kernel(%arg0: i32, %arg1: memref<16x128xf32, #tpu.memory_space<vmem>>, %arg2: memref<128x384xf32, #tpu.memory_space<vmem>>, %arg3: memref<16x128xf32, #tpu.memory_space<vmem>>) attributes {dimension_semantics = [#tpu.dimension_semantics<arbitrary>], iteration_bounds = array<i64: 1>, scalar_prefetch = 0 : i64, scratch_operands = 0 : i64, tpu.core_type = #tpu.core_type<tc>, window_params = [{pipeline_mode = #tpu.pipeline_mode<synchronous>, transform_indices = @transform_0, window_bounds = array<i64: 16, 128>}, {pipeline_mode = #tpu.pipeline_mode<synchronous>, transform_indices = @transform_1, window_bounds = array<i64: 128, 384>}, {pipeline_mode = #tpu.pipeline_mode<synchronous>, transform_indices = @transform_2, window_bounds = array<i64: 16, 128>}]} {
    %c0 = arith.constant 0 : index
    %c0_0 = arith.constant 0 : index
    %0 = vector.load %arg1[%c0, %c0_0] : memref<16x128xf32, #tpu.memory_space<vmem>>, vector<16x128xf32>
    %c0_1 = arith.constant 0 : index
    %c0_2 = arith.constant 0 : index
    %1 = vector.load %arg2[%c0_1, %c0_2] : memref<128x384xf32, #tpu.memory_space<vmem>>, vector<128x384xf32>
    %cst = arith.constant dense<0.000000e+00> : vector<16x384xf32>
    %2 = tpu.matmul %0, %1, %cst {dimension_numbers = #tpu.dot_dimension_numbers<[1], [0], [0], [1], [0, 0, 1, 1], [], []>} : vector<16x128xf32>, vector<128x384xf32>, vector<16x384xf32> -> vector<16x384xf32>
    %3 = vector.shape_cast %2 : vector<16x384xf32> to vector<2x8x384xf32>
    %4 = vector.extract_strided_slice %3 {offsets = [0, 0, 0], sizes = [2, 8, 128], strides = [1, 1, 1]} : vector<2x8x384xf32> to vector<2x8x128xf32>
    %5 = vector.extract_strided_slice %3 {offsets = [0, 0, 128], sizes = [2, 8, 128], strides = [1, 1, 1]} : vector<2x8x384xf32> to vector<2x8x128xf32>
    %6 = vector.extract_strided_slice %3 {offsets = [0, 0, 256], sizes = [2, 8, 128], strides = [1, 1, 1]} : vector<2x8x384xf32> to vector<2x8x128xf32>
    %cst_3 = arith.constant dense<0.000000e+00> : vector<2x8x8xf32>
    %7 = tpu.matmul %4, %5, %cst_3 {dimension_numbers = #tpu.dot_dimension_numbers<[2], [2], [1], [1], [0, 0, 0, 1, 1, 1], [0], [0]>} : vector<2x8x128xf32>, vector<2x8x128xf32>, vector<2x8x8xf32> -> vector<2x8x8xf32>
    %8 = tpu.iota {dimensions = array<i32: 1>} : vector<2x8x8xi32>
    %9 = tpu.iota {dimensions = array<i32: 2>} : vector<2x8x8xi32>
    %10 = arith.cmpi sle, %9, %8 : vector<2x8x8xi32>
    %cst_4 = arith.constant 0xFF800000 : f32
    %11 = vector.broadcast %cst_4 : f32 to vector<2x8x8xf32>
    %12 = arith.select %10, %7, %11 : vector<2x8x8xi1>, vector<2x8x8xf32>
    %cst_5 = arith.constant dense<0xFF800000> : vector<2x8xf32>
    %13 = vector.multi_reduction <maximumf>, %12, %cst_5 [2] : vector<2x8x8xf32> to vector<2x8xf32>
    %14 = vector.shape_cast %13 : vector<2x8xf32> to vector<2x8x1xf32>
    %15 = vector.broadcast %14 : vector<2x8x1xf32> to vector<2x8x8xf32>
    %16 = arith.subf %12, %15 : vector<2x8x8xf32>
    %17 = math.exp %16 : vector<2x8x8xf32>
    %cst_6 = arith.constant dense<0.000000e+00> : vector<2x8xf32>
    %18 = vector.multi_reduction <add>, %17, %cst_6 [2] : vector<2x8x8xf32> to vector<2x8xf32>
    %19 = vector.shape_cast %18 : vector<2x8xf32> to vector<2x8x1xf32>
    %20 = vector.broadcast %19 : vector<2x8x1xf32> to vector<2x8x8xf32>
    %21 = arith.divf %17, %20 : vector<2x8x8xf32>
    %cst_7 = arith.constant dense<0.000000e+00> : vector<2x8x128xf32>
    %22 = tpu.matmul %21, %6, %cst_7 {dimension_numbers = #tpu.dot_dimension_numbers<[2], [1], [1], [2], [0, 0, 0, 1, 1, 2], [0], [0]>} : vector<2x8x8xf32>, vector<2x8x128xf32>, vector<2x8x128xf32> -> vector<2x8x128xf32>
    %23 = vector.shape_cast %22 : vector<2x8x128xf32> to vector<16x128xf32>
    %c0_8 = arith.constant 0 : index
    %c0_9 = arith.constant 0 : index
    %24 = vector.load %arg3[%c0_8, %c0_9] : memref<16x128xf32, #tpu.memory_space<vmem>>, vector<16x128xf32>
    tpu.vector_store %arg3[%c0_8, %c0_9], %23 {strides = array<i32>} : memref<16x128xf32, #tpu.memory_space<vmem>>, vector<16x128xf32>,
    return
  }
  func.func @transform_0(%arg0: i32) -> (i32, i32) {
    %c0_i32 = arith.constant 0 : i32
    %c0_i32_0 = arith.constant 0 : i32
    %c0_i32_1 = arith.constant 0 : i32
    return %c0_i32, %c0_i32_0 : i32, i32
  }
  func.func @transform_1(%arg0: i32) -> (i32, i32) {
    %c0_i32 = arith.constant 0 : i32
    %c0_i32_0 = arith.constant 0 : i32
    %c0_i32_1 = arith.constant 0 : i32
    return %c0_i32, %c0_i32_0 : i32, i32
  }
  func.func @transform_2(%arg0: i32) -> (i32, i32) {
    %c0_i32 = arith.constant 0 : i32
    %c0_i32_0 = arith.constant 0 : i32
    %c0_i32_1 = arith.constant 0 : i32
    return %c0_i32, %c0_i32_0 : i32, i32
  }
}

</mosaic_0001>

<llo_original>
// kernel: head_forward.1
$region0: #{head_forward.1}
  #allocation0 [shape = 'u32[]', space=smem, size = 0x4, offset = 0x4, fixed_abs, tag = 'smem constant byte address 0x4 - core index']
  #allocation1 [shape = 'u32[144,128]{1,0:T(1,128)}', space=vmem, size = 0x12000, scoped, tag = 'internal scratch']
  %s0 = inlined_call_operand.vmem [shape: f32[16,128], index: 0, kind: input, shape index: {}]
  %s1 = inlined_call_operand.vmem [shape: f32[128,384], index: 1, kind: input, shape index: {}]
  %s2 = inlined_call_operand.vmem [shape: f32[16,128], index: 2, kind: output, shape index: {}]
  %s3 = sld [smem:[#allocation0]]
  $region18: #{head_forward.1} parent=0
    _
  %s5 = ssub.s32 1, %s3
  %s6 = scalar_select 0, %s5, %s3
  // Predicated region
  $region2: #{head_forward.1} parent=0 // pred_check
    _
  $region3: #{head_forward.1} parent=0 // pred_check_branch
    %8 = sbr.rel (0) target = $region5
  $region4: #{head_forward.1} parent=0 // pred_region
    _
  $region5: #{head_forward.1} parent=0 // pred_fallthru
    _
  // Predicated region
  $region6: #{head_forward.1} parent=0 // pred_check
    _
  $region7: #{head_forward.1} parent=0 // pred_check_branch
    %10 = sbr.rel (0) target = $region9
  $region8: #{head_forward.1} parent=0 // pred_region
    _
  $region9: #{head_forward.1} parent=0 // pred_fallthru
    _
  %v11 = vld [vmem:[%s0] sm:$0xff]
  %v12 = vld [vmem:[%s0 + $0x8] sm:$0xff]
  %v13 = vld [vmem:[%s1] sm:$0xff]
  %v14 = vld [vmem:[%s1 + $0x8] sm:$0xff]
  %v15 = vld [vmem:[%s1 + $0x10] sm:$0xff]
  %v16 = vld [vmem:[%s1 + $0x18] sm:$0xff]
  %v17 = vld [vmem:[%s1 + $0x20] sm:$0xff]
  %v18 = vld [vmem:[%s1 + $0x28] sm:$0xff]
  %v19 = vld [vmem:[%s1 + $0x30] sm:$0xff]
  %v20 = vld [vmem:[%s1 + $0x38] sm:$0xff]
  %v21 = vld [vmem:[%s1 + $0x40] sm:$0xff]
  %v22 = vld [vmem:[%s1 + $0x48] sm:$0xff]
  %v23 = vld [vmem:[%s1 + $0x50] sm:$0xff]
  %v24 = vld [vmem:[%s1 + $0x58] sm:$0xff]
  %v25 = vld [vmem:[%s1 + $0x60] sm:$0xff]
  %v26 = vld [vmem:[%s1 + $0x68] sm:$0xff]
  %v27 = vld [vmem:[%s1 + $0x70] sm:$0xff]
  %v28 = vld [vmem:[%s1 + $0x78] sm:$0xff]
  %v29 = vld [vmem:[%s1 + $0x80] sm:$0xff]
  %v30 = vld [vmem:[%s1 + $0x88] sm:$0xff]
  %v31 = vld [vmem:[%s1 + $0x90] sm:$0xff]
  %v32 = vld [vmem:[%s1 + $0x98] sm:$0xff]
  %v33 = vld [vmem:[%s1 + $0xa0] sm:$0xff]
  %v34 = vld [vmem:[%s1 + $0xa8] sm:$0xff]
  %v35 = vld [vmem:[%s1 + $0xb0] sm:$0xff]
  %v36 = vld [vmem:[%s1 + $0xb8] sm:$0xff]
  %v37 = vld [vmem:[%s1 + $0xc0] sm:$0xff]
  %v38 = vld [vmem:[%s1 + $0xc8] sm:$0xff]
  %v39 = vld [vmem:[%s1 + $0xd0] sm:$0xff]
  %v40 = vld [vmem:[%s1 + $0xd8] sm:$0xff]
  %v41 = vld [vmem:[%s1 + $0xe0] sm:$0xff]
  %v42 = vld [vmem:[%s1 + $0xe8] sm:$0xff]
  %v43 = vld [vmem:[%s1 + $0xf0] sm:$0xff]
  %v44 = vld [vmem:[%s1 + $0xf8] sm:$0xff]
  %v45 = vld [vmem:[%s1 + $0x100] sm:$0xff]
  %v46 = vld [vmem:[%s1 + $0x108] sm:$0xff]
  %v47 = vld [vmem:[%s1 + $0x110] sm:$0xff]
  %v48 = vld [vmem:[%s1 + $0x118] sm:$0xff]
  %v49 = vld [vmem:[%s1 + $0x120] sm:$0xff]
  %v50 = vld [vmem:[%s1 + $0x128] sm:$0xff]
  %v51 = vld [vmem:[%s1 + $0x130] sm:$0xff]
  %v52 = vld [vmem:[%s1 + $0x138] sm:$0xff]
  %v53 = vld [vmem:[%s1 + $0x140] sm:$0xff]
  %v54 = vld [vmem:[%s1 + $0x148] sm:$0xff]
  %v55 = vld [vmem:[%s1 + $0x150] sm:$0xff]
  %v56 = vld [vmem:[%s1 + $0x158] sm:$0xff]
  %v57 = vld [vmem:[%s1 + $0x160] sm:$0xff]
  %v58 = vld [vmem:[%s1 + $0x168] sm:$0xff]
  %v59 = vld [vmem:[%s1 + $0x170] sm:$0xff]
  %v60 = vld [vmem:[%s1 + $0x178] sm:$0xff]
  %61 = vmatprep.subr.mxu0 %v14
  %62 = vmatpush1.msra.mxu0 %v13
  %63 = vmatprep.subr.mxu0 %v17
  %64 = vmatpush1.msra.mxu0 %v16
  %65 = vmatprep.subr.mxu0 %v20
  %66 = vmatpush1.msra.mxu0 %v19
  %67 = vmatprep.subr.mxu0 %v23
  %68 = vmatpush1.msra.mxu0 %v22
  %69 = vmatprep.subr.mxu0 %v26
  %70 = vmatpush1.msra.mxu0 %v25
  %71 = vmatprep.subr.mxu0 %v29
  %72 = vmatpush1.msra.mxu0 %v28
  %73 = vmatprep.subr.mxu0 %v32
  %74 = vmatpush1.msra.mxu0 %v31
  %75 = vmatprep.subr.mxu0 %v35
  %76 = vmatpush1.msra.mxu0 %v34
  %77 = vmatprep.subr.mxu0 %v38
  %78 = vmatpush1.msra.mxu0 %v37
  %79 = vmatprep.subr.mxu0 %v41
  %80 = vmatpush1.msra.mxu0 %v40
  %81 = vmatprep.subr.mxu0 %v44
  %82 = vmatpush1.msra.mxu0 %v43
  %83 = vmatprep.subr.mxu0 %v47
  %84 = vmatpush1.msra.mxu0 %v46
  %85 = vmatprep.subr.mxu0 %v50
  %86 = vmatpush1.msra.mxu0 %v49
  %87 = vmatprep.subr.mxu0 %v53
  %88 = vmatpush1.msra.mxu0 %v52
  %89 = vmatprep.subr.mxu0 %v56
  %90 = vmatpush1.msra.mxu0 %v55
  %91 = vmatprep.subr.mxu0 %v59
  %92 = vmatpush1.msra.mxu0 %v58
  %93 = vmatprep.subr.mxu0 0.0
  %94 = vmatpush1.msra.mxu0 0.0
  %95 = vmatprep.subr.mxu0 0.0
  %96 = vmatpush1.msra.mxu0 0.0
  %97 = vmatprep.subr.mxu0 0.0
  %98 = vmatpush1.msra.mxu0 0.0
  %99 = vmatprep.subr.mxu0 0.0
  %100 = vmatpush1.msra.mxu0 0.0
  %101 = vmatprep.subr.mxu0 0.0
  %102 = vmatpush1.msra.mxu0 0.0
  %103 = vmatprep.subr.mxu0 0.0
  %104 = vmatpush1.msra.mxu0 0.0
  %105 = vmatprep.subr.mxu0 0.0
  %106 = vmatpush1.msra.mxu0 0.0
  %107 = vmatprep.subr.mxu0 0.0
  %108 = vmatpush1.msra.mxu0 0.0
  %109 = vmatprep.subr.mxu0 0.0
  %110 = vmatpush1.msra.mxu0 0.0
  %111 = vmatprep.subr.mxu0 0.0
  %112 = vmatpush1.msra.mxu0 0.0
  %113 = vmatprep.subr.mxu0 0.0
  %114 = vmatpush1.msra.mxu0 0.0
  %115 = vmatprep.subr.mxu0 0.0
  %116 = vmatpush1.msra.mxu0 0.0
  %117 = vmatprep.subr.mxu0 0.0
  %118 = vmatpush1.msra.mxu0 0.0
  %119 = vmatprep.subr.mxu0 0.0
  %120 = vmatpush1.msra.mxu0 0.0
  %121 = vmatprep.subr.mxu0 0.0
  %122 = vmatpush1.msra.mxu0 0.0
  %123 = vmatprep.subr.mxu0 0.0
  %124 = vmatpush1.msra.mxu0 0.0
  %125 = vmatprep.mubr.f32.mxu0 0.0
  %126 = vmatmul.mubr.f32.gmra.mrb[0].mxu0 %v11
  %v127 = vpop.f32.mrb[0].mxu0
  %v128 = vadd.f32 0.0, %v127
  %v129 = vpop.f32.mrb[0].mxu0
  %v130 = vadd.f32 0.0, %v129
  %131 = vmatprep.mubr.f32.mxu0 0.0
  %132 = vmatmul.mubr.f32.gmra.mrb[0].mxu0 %v12
  %v133 = vpop.f32.mrb[0].mxu0
  %v134 = vadd.f32 0.0, %v133
  %v135 = vpop.f32.mrb[0].mxu0
  %v136 = vadd.f32 0.0, %v135
  %137 = vdwg.mxu0
  %138 = vmatprep.subr.mxu0 0.0
  %139 = vmatpush1.msra.mxu0 %v15
  %140 = vmatprep.subr.mxu0 0.0
  %141 = vmatpush1.msra.mxu0 %v18
  %142 = vmatprep.subr.mxu0 0.0
  %143 = vmatpush1.msra.mxu0 %v21
  %144 = vmatprep.subr.mxu0 0.0
  %145 = vmatpush1.msra.mxu0 %v24
  %146 = vmatprep.subr.mxu0 0.0
  %147 = vmatpush1.msra.mxu0 %v27
  %148 = vmatprep.subr.mxu0 0.0
  %149 = vmatpush1.msra.mxu0 %v30
  %150 = vmatprep.subr.mxu0 0.0
  %151 = vmatpush1.msra.mxu0 %v33
  %152 = vmatprep.subr.mxu0 0.0
  %153 = vmatpush1.msra.mxu0 %v36
  %154 = vmatprep.subr.mxu0 0.0
  %155 = vmatpush1.msra.mxu0 %v39
  %156 = vmatprep.subr.mxu0 0.0
  %157 = vmatpush1.msra.mxu0 %v42
  %158 = vmatprep.subr.mxu0 0.0
  %159 = vmatpush1.msra.mxu0 %v45
  %160 = vmatprep.subr.mxu0 0.0
  %161 = vmatpush1.msra.mxu0 %v48
  %162 = vmatprep.subr.mxu0 0.0
  %163 = vmatpush1.msra.mxu0 %v51
  %164 = vmatprep.subr.mxu0 0.0
  %165 = vmatpush1.msra.mxu0 %v54
  %166 = vmatprep.subr.mxu0 0.0
  %167 = vmatpush1.msra.mxu0 %v57
  %168 = vmatprep.subr.mxu0 0.0
  %169 = vmatpush1.msra.mxu0 %v60
  %170 = vmatprep.subr.mxu0 0.0
  %171 = vmatpush1.msra.mxu0 0.0
  %172 = vmatprep.subr.mxu0 0.0
  %173 = vmatpush1.msra.mxu0 0.0
  %174 = vmatprep.subr.mxu0 0.0
  %175 = vmatpush1.msra.mxu0 0.0
  %176 = vmatprep.subr.mxu0 0.0
  %177 = vmatpush1.msra.mxu0 0.0
  %178 = vmatprep.subr.mxu0 0.0
  %179 = vmatpush1.msra.mxu0 0.0
  %180 = vmatprep.subr.mxu0 0.0
  %181 = vmatpush1.msra.mxu0 0.0
  %182 = vmatprep.subr.mxu0 0.0
  %183 = vmatpush1.msra.mxu0 0.0
  %184 = vmatprep.subr.mxu0 0.0
  %185 = vmatpush1.msra.mxu0 0.0
  %186 = vmatprep.subr.mxu0 0.0
  %187 = vmatpush1.msra.mxu0 0.0
  %188 = vmatprep.subr.mxu0 0.0
  %189 = vmatpush1.msra.mxu0 0.0
  %190 = vmatprep.subr.mxu0 0.0
  %191 = vmatpush1.msra.mxu0 0.0
  %192 = vmatprep.subr.mxu0 0.0
  %193 = vmatpush1.msra.mxu0 0.0
  %194 = vmatprep.subr.mxu0 0.0
  %195 = vmatpush1.msra.mxu0 0.0
  %196 = vmatprep.subr.mxu0 0.0
  %197 = vmatpush1.msra.mxu0 0.0
  %198 = vmatprep.subr.mxu0 0.0
  %199 = vmatpush1.msra.mxu0 0.0
  %200 = vmatprep.subr.mxu0 0.0
  %201 = vmatpush1.msra.mxu0 0.0
  %202 = vmatprep.mubr.f32.mxu0 0.0
  %203 = vmatmul.mubr.f32.gmra.mrb[0].mxu0 %v11
  %v204 = vpop.f32.mrb[0].mxu0
  %v205 = vadd.f32 0.0, %v204
  %v206 = vpop.f32.mrb[0].mxu0
  %207 = vmatprep.mubr.f32.mxu0 0.0
  %208 = vmatmul.mubr.f32.gmra.mrb[0].mxu0 %v12
  %v209 = vpop.f32.mrb[0].mxu0
  %v210 = vadd.f32 0.0, %v209
  %v211 = vpop.f32.mrb[0].mxu0
  %212 = vdwg.mxu0
  %213 = vmatprep.subr.mxu0 0.0
  %214 = vmatpush1.xpose.msra.mxu0 %v130
  %215 = vmatprep.subr.mxu0 0.0
  %216 = vmatpush1.xpose.msra.mxu0 0.0
  %217 = vmatprep.subr.mxu0 0.0
  %218 = vmatpush1.xpose.msra.mxu0 0.0
  %219 = vmatprep.subr.mxu0 0.0
  %220 = vmatpush1.xpose.msra.mxu0 0.0
  %221 = vmatprep.subr.mxu0 0.0
  %222 = vmatpush1.xpose.msra.mxu0 0.0
  %223 = vmatprep.subr.mxu0 0.0
  %224 = vmatpush1.xpose.msra.mxu0 0.0
  %225 = vmatprep.subr.mxu0 0.0
  %226 = vmatpush1.xpose.msra.mxu0 0.0
  %227 = vmatprep.subr.mxu0 0.0
  %228 = vmatpush1.xpose.msra.mxu0 0.0
  %229 = vmatprep.subr.mxu0 0.0
  %230 = vmatpush1.xpose.msra.mxu0 0.0
  %231 = vmatprep.subr.mxu0 0.0
  %232 = vmatpush1.xpose.msra.mxu0 0.0
  %233 = vmatprep.subr.mxu0 0.0
  %234 = vmatpush1.xpose.msra.mxu0 0.0
  %235 = vmatprep.subr.mxu0 0.0
  %236 = vmatpush1.xpose.msra.mxu0 0.0
  %237 = vmatprep.subr.mxu0 0.0
  %238 = vmatpush1.xpose.msra.mxu0 0.0
  %239 = vmatprep.subr.mxu0 0.0
  %240 = vmatpush1.xpose.msra.mxu0 0.0
  %241 = vmatprep.subr.mxu0 0.0
  %242 = vmatpush1.xpose.msra.mxu0 0.0
  %243 = vmatprep.subr.mxu0 0.0
  %244 = vmatpush1.xpose.msra.mxu0 0.0
  %245 = vmatprep.subr.mxu0 0.0
  %246 = vmatpush1.xpose.msra.mxu0 0.0
  %247 = vmatprep.subr.mxu0 0.0
  %248 = vmatpush1.xpose.msra.mxu0 0.0
  %249 = vmatprep.subr.mxu0 0.0
  %250 = vmatpush1.xpose.msra.mxu0 0.0
  %251 = vmatprep.subr.mxu0 0.0
  %252 = vmatpush1.xpose.msra.mxu0 0.0
  %253 = vmatprep.subr.mxu0 0.0
  %254 = vmatpush1.xpose.msra.mxu0 0.0
  %255 = vmatprep.subr.mxu0 0.0
  %256 = vmatpush1.xpose.msra.mxu0 0.0
  %257 = vmatprep.subr.mxu0 0.0
  %258 = vmatpush1.xpose.msra.mxu0 0.0
  %259 = vmatprep.subr.mxu0 0.0
  %260 = vmatpush1.xpose.msra.mxu0 0.0
  %261 = vmatprep.subr.mxu0 0.0
  %262 = vmatpush1.xpose.msra.mxu0 0.0
  %263 = vmatprep.subr.mxu0 0.0
  %264 = vmatpush1.xpose.msra.mxu0 0.0
  %265 = vmatprep.subr.mxu0 0.0
  %266 = vmatpush1.xpose.msra.mxu0 0.0
  %267 = vmatprep.subr.mxu0 0.0
  %268 = vmatpush1.xpose.msra.mxu0 0.0
  %269 = vmatprep.subr.mxu0 0.0
  %270 = vmatpush1.xpose.msra.mxu0 0.0
  %271 = vmatprep.subr.mxu0 0.0
  %272 = vmatpush1.xpose.msra.mxu0 0.0
  %273 = vmatprep.subr.mxu0 0.0
  %274 = vmatpush1.xpose.msra.mxu0 0.0
  %275 = vmatprep.subr.mxu0 0.0
  %276 = vmatpush1.xpose.msra.mxu0 0.0
  %277 = vmatprep.mubr.f32.mxu0 0.0
  %278 = vmatmul.mubr.f32.gmra.mrb[0].mxu0 %v128
  %v279 = vpop.f32.mrb[0].mxu0
  %v280 = vadd.f32 0.0, %v279
  %v281 = vpop.f32.mrb[0].mxu0
  %282 = vdwg.mxu0
  %283 = vmatprep.subr.mxu0 0.0
  %284 = vmatpush1.xpose.msra.mxu0 %v136
  %285 = vmatprep.subr.mxu0 0.0
  %286 = vmatpush1.xpose.msra.mxu0 0.0
  %287 = vmatprep.subr.mxu0 0.0
  %288 = vmatpush1.xpose.msra.mxu0 0.0
  %289 = vmatprep.subr.mxu0 0.0
  %290 = vmatpush1.xpose.msra.mxu0 0.0
  %291 = vmatprep.subr.mxu0 0.0
  %292 = vmatpush1.xpose.msra.mxu0 0.0
  %293 = vmatprep.subr.mxu0 0.0
  %294 = vmatpush1.xpose.msra.mxu0 0.0
  %295 = vmatprep.subr.mxu0 0.0
  %296 = vmatpush1.xpose.msra.mxu0 0.0
  %297 = vmatprep.subr.mxu0 0.0
  %298 = vmatpush1.xpose.msra.mxu0 0.0
  %299 = vmatprep.subr.mxu0 0.0
  %300 = vmatpush1.xpose.msra.mxu0 0.0
  %301 = vmatprep.subr.mxu0 0.0
  %302 = vmatpush1.xpose.msra.mxu0 0.0
  %303 = vmatprep.subr.mxu0 0.0
  %304 = vmatpush1.xpose.msra.mxu0 0.0
  %305 = vmatprep.subr.mxu0 0.0
  %306 = vmatpush1.xpose.msra.mxu0 0.0
  %307 = vmatprep.subr.mxu0 0.0
  %308 = vmatpush1.xpose.msra.mxu0 0.0
  %309 = vmatprep.subr.mxu0 0.0
  %310 = vmatpush1.xpose.msra.mxu0 0.0
  %311 = vmatprep.subr.mxu0 0.0
  %312 = vmatpush1.xpose.msra.mxu0 0.0
  %313 = vmatprep.subr.mxu0 0.0
  %314 = vmatpush1.xpose.msra.mxu0 0.0
  %315 = vmatprep.subr.mxu0 0.0
  %316 = vmatpush1.xpose.msra.mxu0 0.0
  %317 = vmatprep.subr.mxu0 0.0
  %318 = vmatpush1.xpose.msra.mxu0 0.0
  %319 = vmatprep.subr.mxu0 0.0
  %320 = vmatpush1.xpose.msra.mxu0 0.0
  %321 = vmatprep.subr.mxu0 0.0
  %322 = vmatpush1.xpose.msra.mxu0 0.0
  %323 = vmatprep.subr.mxu0 0.0
  %324 = vmatpush1.xpose.msra.mxu0 0.0
  %325 = vmatprep.subr.mxu0 0.0
  %326 = vmatpush1.xpose.msra.mxu0 0.0
  %327 = vmatprep.subr.mxu0 0.0
  %328 = vmatpush1.xpose.msra.mxu0 0.0
  %329 = vmatprep.subr.mxu0 0.0
  %330 = vmatpush1.xpose.msra.mxu0 0.0
  %331 = vmatprep.subr.mxu0 0.0
  %332 = vmatpush1.xpose.msra.mxu0 0.0
  %333 = vmatprep.subr.mxu0 0.0
  %334 = vmatpush1.xpose.msra.mxu0 0.0
  %335 = vmatprep.subr.mxu0 0.0
  %336 = vmatpush1.xpose.msra.mxu0 0.0
  %337 = vmatprep.subr.mxu0 0.0
  %338 = vmatpush1.xpose.msra.mxu0 0.0
  %339 = vmatprep.subr.mxu0 0.0
  %340 = vmatpush1.xpose.msra.mxu0 0.0
  %341 = vmatprep.subr.mxu0 0.0
  %342 = vmatpush1.xpose.msra.mxu0 0.0
  %343 = vmatprep.subr.mxu0 0.0
  %344 = vmatpush1.xpose.msra.mxu0 0.0
  %345 = vmatprep.subr.mxu0 0.0
  %346 = vmatpush1.xpose.msra.mxu0 0.0
  %347 = vmatprep.mubr.f32.mxu0 0.0
  %348 = vmatmul.mubr.f32.gmra.mrb[0].mxu0 %v134
  %v349 = vpop.f32.mrb[0].mxu0
  %v350 = vadd.f32 0.0, %v349
  %v351 = vpop.f32.mrb[0].mxu0
  %352 = vdwg.mxu0
  %v353 = vlaneseq
  %v354 = vshrl.u32 %v353, 7
  %v355 = vlaneseq
  %v356 = vand.u32 %v355, 127
  %vm357 = vcmp.le.s32.totalorder %v356, %v354
  %v358 = vsel %vm357, %v280, -inf
  %v359 = vsel %vm357, %v350, -inf
  %vm360 = vcmask 64512
  %v361 = vsel %vm360, %v358, -inf
  %362 = vmax.xlane.f32.xlu0 %v361
  %v363 = vpop.xlane.xlu0 %362
  %v364 = vsel %vm360, %v359, -inf
  %365 = vmax.xlane.f32.xlu0 %v364
  %v366 = vpop.xlane.xlu0 %365
  %v367 = vsub.f32 %v358, %v363
  %v368 = vsub.f32 %v359, %v366
  %v369 = vmul.f32 %v367, 1.442695
  %v370 = vpow.pop %v369
  %v371 = vmul.f32 %v368, 1.442695
  %v372 = vpow.pop %v371
  %v373 = vsel %vm360, %v370, 0.0
  %374 = vadd.xlane.f32.xlu0 %v373
  %v375 = vpop.xlane.xlu0 %374
  %v376 = vsel %vm360, %v372, 0.0
  %377 = vadd.xlane.f32.xlu0 %v376
  %v378 = vpop.xlane.xlu0 %377
  %v379 = vrcp.pop %v375
  %v380 = vmul.f32 %v370, %v379
  %v381 = vrcp.pop %v378
  %v382 = vmul.f32 %v372, %v381
  %v384 = vsel %vm360, %v380, 0
  %386 = vmatprep.subr.mxu0 0.0
  %387 = vmatpush1.msra.mxu0 %v205
  %388 = vmatprep.subr.mxu0 0.0
  %389 = vmatpush1.msra.mxu0 0.0
  %390 = vmatprep.subr.mxu0 0.0
  %391 = vmatpush1.msra.mxu0 0.0
  %392 = vmatprep.subr.mxu0 0.0
  %393 = vmatpush1.msra.mxu0 0.0
  %394 = vmatprep.subr.mxu0 0.0
  %395 = vmatpush1.msra.mxu0 0.0
  %396 = vmatprep.subr.mxu0 0.0
  %397 = vmatpush1.msra.mxu0 0.0
  %398 = vmatprep.subr.mxu0 0.0
  %399 = vmatpush1.msra.mxu0 0.0
  %400 = vmatprep.subr.mxu0 0.0
  %401 = vmatpush1.msra.mxu0 0.0
  %402 = vmatprep.subr.mxu0 0.0
  %403 = vmatpush1.msra.mxu0 0.0
  %404 = vmatprep.subr.mxu0 0.0
  %405 = vmatpush1.msra.mxu0 0.0
  %406 = vmatprep.subr.mxu0 0.0
  %407 = vmatpush1.msra.mxu0 0.0
  %408 = vmatprep.subr.mxu0 0.0
  %409 = vmatpush1.msra.mxu0 0.0
  %410 = vmatprep.subr.mxu0 0.0
  %411 = vmatpush1.msra.mxu0 0.0
  %412 = vmatprep.subr.mxu0 0.0
  %413 = vmatpush1.msra.mxu0 0.0
  %414 = vmatprep.subr.mxu0 0.0
  %415 = vmatpush1.msra.mxu0 0.0
  %416 = vmatprep.subr.mxu0 0.0
  %417 = vmatpush1.msra.mxu0 0.0
  %418 = vmatprep.subr.mxu0 0.0
  %419 = vmatpush1.msra.mxu0 0.0
  %420 = vmatprep.subr.mxu0 0.0
  %421 = vmatpush1.msra.mxu0 0.0
  %422 = vmatprep.subr.mxu0 0.0
  %423 = vmatpush1.msra.mxu0 0.0
  %424 = vmatprep.subr.mxu0 0.0
  %425 = vmatpush1.msra.mxu0 0.0
  %426 = vmatprep.subr.mxu0 0.0
  %427 = vmatpush1.msra.mxu0 0.0
  %428 = vmatprep.subr.mxu0 0.0
  %429 = vmatpush1.msra.mxu0 0.0
  %430 = vmatprep.subr.mxu0 0.0
  %431 = vmatpush1.msra.mxu0 0.0
  %432 = vmatprep.subr.mxu0 0.0
  %433 = vmatpush1.msra.mxu0 0.0
  %434 = vmatprep.subr.mxu0 0.0
  %435 = vmatpush1.msra.mxu0 0.0
  %436 = vmatprep.subr.mxu0 0.0
  %437 = vmatpush1.msra.mxu0 0.0
  %438 = vmatprep.subr.mxu0 0.0
  %439 = vmatpush1.msra.mxu0 0.0
  %440 = vmatprep.subr.mxu0 0.0
  %441 = vmatpush1.msra.mxu0 0.0
  %442 = vmatprep.subr.mxu0 0.0
  %443 = vmatpush1.msra.mxu0 0.0
  %444 = vmatprep.subr.mxu0 0.0
  %445 = vmatpush1.msra.mxu0 0.0
  %446 = vmatprep.subr.mxu0 0.0
  %447 = vmatpush1.msra.mxu0 0.0
  %448 = vmatprep.subr.mxu0 0.0
  %449 = vmatpush1.msra.mxu0 0.0
  %450 = vmatprep.mubr.f32.mxu0 0.0
  %451 = vmatmul.mubr.f32.gmra.mrb[0].mxu0 %v384
  %v452 = vpop.f32.mrb[0].mxu0
  %v453 = vadd.f32 0.0, %v452
  %v454 = vpop.f32.mrb[0].mxu0
  %455 = vdwg.mxu0
  %v457 = vsel %vm360, %v382, 0
  %459 = vmatprep.subr.mxu0 0.0
  %460 = vmatpush1.msra.mxu0 %v210
  %461 = vmatprep.subr.mxu0 0.0
  %462 = vmatpush1.msra.mxu0 0.0
  %463 = vmatprep.subr.mxu0 0.0
  %464 = vmatpush1.msra.mxu0 0.0
  %465 = vmatprep.subr.mxu0 0.0
  %466 = vmatpush1.msra.mxu0 0.0
  %467 = vmatprep.subr.mxu0 0.0
  %468 = vmatpush1.msra.mxu0 0.0
  %469 = vmatprep.subr.mxu0 0.0
  %470 = vmatpush1.msra.mxu0 0.0
  %471 = vmatprep.subr.mxu0 0.0
  %472 = vmatpush1.msra.mxu0 0.0
  %473 = vmatprep.subr.mxu0 0.0
  %474 = vmatpush1.msra.mxu0 0.0
  %475 = vmatprep.subr.mxu0 0.0
  %476 = vmatpush1.msra.mxu0 0.0
  %477 = vmatprep.subr.mxu0 0.0
  %478 = vmatpush1.msra.mxu0 0.0
  %479 = vmatprep.subr.mxu0 0.0
  %480 = vmatpush1.msra.mxu0 0.0
  %481 = vmatprep.subr.mxu0 0.0
  %482 = vmatpush1.msra.mxu0 0.0
  %483 = vmatprep.subr.mxu0 0.0
  %484 = vmatpush1.msra.mxu0 0.0
  %485 = vmatprep.subr.mxu0 0.0
  %486 = vmatpush1.msra.mxu0 0.0
  %487 = vmatprep.subr.mxu0 0.0
  %488 = vmatpush1.msra.mxu0 0.0
  %489 = vmatprep.subr.mxu0 0.0
  %490 = vmatpush1.msra.mxu0 0.0
  %491 = vmatprep.subr.mxu0 0.0
  %492 = vmatpush1.msra.mxu0 0.0
  %493 = vmatprep.subr.mxu0 0.0
  %494 = vmatpush1.msra.mxu0 0.0
  %495 = vmatprep.subr.mxu0 0.0
  %496 = vmatpush1.msra.mxu0 0.0
  %497 = vmatprep.subr.mxu0 0.0
  %498 = vmatpush1.msra.mxu0 0.0
  %499 = vmatprep.subr.mxu0 0.0
  %500 = vmatpush1.msra.mxu0 0.0
  %501 = vmatprep.subr.mxu0 0.0
  %502 = vmatpush1.msra.mxu0 0.0
  %503 = vmatprep.subr.mxu0 0.0
  %504 = vmatpush1.msra.mxu0 0.0
  %505 = vmatprep.subr.mxu0 0.0
  %506 = vmatpush1.msra.mxu0 0.0
  %507 = vmatprep.subr.mxu0 0.0
  %508 = vmatpush1.msra.mxu0 0.0
  %509 = vmatprep.subr.mxu0 0.0
  %510 = vmatpush1.msra.mxu0 0.0
  %511 = vmatprep.subr.mxu0 0.0
  %512 = vmatpush1.msra.mxu0 0.0
  %513 = vmatprep.subr.mxu0 0.0
  %514 = vmatpush1.msra.mxu0 0.0
  %515 = vmatprep.subr.mxu0 0.0
  %516 = vmatpush1.msra.mxu0 0.0
  %517 = vmatprep.subr.mxu0 0.0
  %518 = vmatpush1.msra.mxu0 0.0
  %519 = vmatprep.subr.mxu0 0.0
  %520 = vmatpush1.msra.mxu0 0.0
  %521 = vmatprep.subr.mxu0 0.0
  %522 = vmatpush1.msra.mxu0 0.0
  %523 = vmatprep.mubr.f32.mxu0 0.0
  %524 = vmatmul.mubr.f32.gmra.mrb[0].mxu0 %v457
  %v525 = vpop.f32.mrb[0].mxu0
  %v526 = vadd.f32 0.0, %v525
  %v527 = vpop.f32.mrb[0].mxu0
  %528 = vdwg.mxu0
  %529 = vst [vmem:[%s2] sm:$0xff] %v453
  %530 = vst [vmem:[%s2 + $0x8] sm:$0xff] %v526
  // Predicated region
  $region10: #{head_forward.1} parent=0 // pred_check
    _
  $region11: #{head_forward.1} parent=0 // pred_check_branch
    %532 = sbr.rel (0) target = $region13
  $region12: #{head_forward.1} parent=0 // pred_region
    _
  $region13: #{head_forward.1} parent=0 // pred_fallthru
    _
  // Predicated region
  $region14: #{head_forward.1} parent=0 // pred_check
    _
  $region15: #{head_forward.1} parent=0 // pred_check_branch
    %534 = sbr.rel (0) target = $region17
  $region16: #{head_forward.1} parent=0 // pred_region
    _
  $region17: #{head_forward.1} parent=0 // pred_fallthru
    _

</llo_original>
